<compile_context>
chip_gen: v7x
topology: tpu7x:2x2x1
jax: 0.10.0
libtpu: 0.0.40
codegen_flags: <defaults>
</compile_context>

<pallas_src>
import jax
import jax.numpy as jnp
from jax.experimental import pallas as pl
from jax.experimental.pallas import tpu as pltpu


def conv1x1_tanh_kernel(w_ref, x_ref, o_ref):
    # w_ref: (C_out, C_in)   x_ref: (C_in, hw_tile)   o_ref: (C_out, hw_tile)
    acc = jnp.dot(w_ref[...], x_ref[...], preferred_element_type=jnp.float32)
    o_ref[...] = jnp.tanh(acc).astype(o_ref.dtype)


def conv1x1_tanh(x_nchw, w_oihw, *, hw_tile=2048, out_dtype=None):
    """1x1 conv (no bias) + tanh, fused.

    x_nchw: (N, C_in, H, W) float32; w_oihw: (C_out, C_in, 1, 1) float32.
    """
    N, C_in, H, W = x_nchw.shape
    C_out = w_oihw.shape[0]
    HW = H * W
    out_dtype = x_nchw.dtype if out_dtype is None else out_dtype

    # Free, contiguous reshapes — no transpose / no extra HBM traffic.
    x = x_nchw.reshape(N, C_in, HW)          # (N, C_in, HW)
    w = w_oihw.reshape(C_out, C_in)          # (C_out, C_in)

    # Lane axis (H*W) must stay a multiple of 128 for unmasked full-width
    # stores. If HW itself is not a multiple of 128, pad it up (cheap,
    # contiguous pad of the last axis) and slice the result afterwards.
    HW_pad = ((HW + 127) // 128) * 128
    if HW_pad != HW:
        x = jnp.pad(x, ((0, 0), (0, 0), (0, HW_pad - HW)))

    # Clamp the tile: multiple of 128, at least 128, at most the padded extent.
    hw_tile = max(128, (hw_tile // 128) * 128)
    hw_tile = min(hw_tile, HW_pad)
    grid = (N, pl.cdiv(HW_pad, hw_tile))     # tail block (if any) is masked

    out = pl.pallas_call(
        conv1x1_tanh_kernel,
        out_shape=jax.ShapeDtypeStruct((N, C_out, HW_pad), out_dtype),
        grid_spec=pltpu.PrefetchScalarGridSpec(
            num_scalar_prefetch=0,
            grid=grid,
            in_specs=[
                # 4 KiB weight, constant index_map -> stays resident in VMEM.
                pl.BlockSpec((C_out, C_in), lambda n, j: (0, 0)),
                # Squeeze the batch dim; kernel sees (C_in, hw_tile).
                pl.BlockSpec((None, C_in, hw_tile), lambda n, j: (n, 0, j)),
            ],
            # Lane-dense output block: unmasked full-width stores.
            out_specs=pl.BlockSpec((None, C_out, hw_tile), lambda n, j: (n, 0, j)),
        ),
        compiler_params=pltpu.CompilerParams(
            # Both axes independent; on v7x (2 TCs) the (1, 2) grid puts one
            # tile on each TensorCore. On v5e/v6e the grid is just a short loop.
            dimension_semantics=("parallel", "parallel"),
        ),
    )(w, x)

    if HW_pad != HW:
        out = out[:, :, :HW]
    return out.reshape(N, C_out, H, W)


if __name__ == "__main__":
    key = jax.random.PRNGKey(0)
    kx, kw = jax.random.split(key)

    # Shapes from the module spec: x0 = randn(1, 16, 64, 64), conv 16 -> 64.
    N, C_in, H, W, C_out = 1, 16, 64, 64, 64
    x = jax.random.normal(kx, (N, C_in, H, W), dtype=jnp.float32)
    # Deterministic conv weight in PyTorch layout (C_out, C_in, 1, 1).
    w = jax.random.normal(kw, (C_out, C_in, 1, 1), dtype=jnp.float32) * 0.1

    y = conv1x1_tanh(x, w)
    jax.block_until_ready(y)

    # Pure-JAX reference for correctness.
    ref = jnp.tanh(
        jnp.einsum("nchw,oc->nohw", x, w.reshape(C_out, C_in))
    )
    assert y.shape == (N, C_out, H, W)
    assert jnp.allclose(y, ref, atol=1e-5, rtol=1e-5)

    print("KERNEL_OK")
</pallas_src>

<mosaic_0001>
module attributes {stable_mosaic.version = 11 : i64} {
  func.func @conv1x1_tanh_kernel(%arg0: i32, %arg1: i32, %arg2: memref<64x16xf32, #tpu.memory_space<vmem>>, %arg3: memref<1x16x2048xf32, #tpu.memory_space<vmem>>, %arg4: memref<1x64x2048xf32, #tpu.memory_space<vmem>>) attributes {dimension_semantics = [#tpu.dimension_semantics<parallel>, #tpu.dimension_semantics<parallel>], iteration_bounds = array<i64: 1, 2>, scalar_prefetch = 0 : i64, scratch_operands = 0 : i64, tpu.core_type = #tpu.core_type<tc>, window_params = [{pipeline_mode = #tpu.pipeline_mode<synchronous>, transform_indices = @transform_0, window_bounds = array<i64: 64, 16>}, {transform_indices = @transform_1, window_bounds = array<i64: 1, 16, 2048>}, {transform_indices = @transform_2, window_bounds = array<i64: 1, 64, 2048>}]} {
    %c0 = arith.constant 0 : index
    %c0_0 = arith.constant 0 : index
    %0 = vector.load %arg2[%c0, %c0_0] : memref<64x16xf32, #tpu.memory_space<vmem>>, vector<64x16xf32>
    %c0_1 = arith.constant 0 : index
    %c0_2 = arith.constant 0 : index
    %c0_3 = arith.constant 0 : index
    %1 = vector.load %arg3[%c0_1, %c0_2, %c0_3] : memref<1x16x2048xf32, #tpu.memory_space<vmem>>, vector<1x16x2048xf32>
    %2 = vector.shape_cast %1 : vector<1x16x2048xf32> to vector<16x2048xf32>
    %cst = arith.constant dense<0.000000e+00> : vector<64x2048xf32>
    %3 = tpu.matmul %0, %2, %cst {dimension_numbers = #tpu.dot_dimension_numbers<[1], [0], [0], [1], [0, 0, 1, 1], [], []>} : vector<64x16xf32>, vector<16x2048xf32>, vector<64x2048xf32> -> vector<64x2048xf32>
    %4 = math.tanh %3 : vector<64x2048xf32>
    %c0_4 = arith.constant 0 : index
    %c0_5 = arith.constant 0 : index
    %c0_6 = arith.constant 0 : index
    %5 = vector.load %arg4[%c0_4, %c0_5, %c0_6] : memref<1x64x2048xf32, #tpu.memory_space<vmem>>, vector<1x64x2048xf32>
    %6 = vector.shape_cast %5 : vector<1x64x2048xf32> to vector<64x2048xf32>
    %7 = vector.shape_cast %4 : vector<64x2048xf32> to vector<1x64x2048xf32>
    tpu.vector_store %arg4[%c0_4, %c0_5, %c0_6], %7 {strides = array<i32>} : memref<1x64x2048xf32, #tpu.memory_space<vmem>>, vector<1x64x2048xf32>,
    return
  }
  func.func @transform_0(%arg0: i32, %arg1: i32) -> (i32, i32) {
    %c0_i32 = arith.constant 0 : i32
    %c0_i32_0 = arith.constant 0 : i32
    %c0_i32_1 = arith.constant 0 : i32
    return %c0_i32, %c0_i32_0 : i32, i32
  }
  func.func @transform_1(%arg0: i32, %arg1: i32) -> (i32, i32, i32) {
    %c0_i32 = arith.constant 0 : i32
    %c0_i32_0 = arith.constant 0 : i32
    return %arg0, %c0_i32, %arg1 : i32, i32, i32
  }
  func.func @transform_2(%arg0: i32, %arg1: i32) -> (i32, i32, i32) {
    %c0_i32 = arith.constant 0 : i32
    %c0_i32_0 = arith.constant 0 : i32
    return %arg0, %c0_i32, %arg1 : i32, i32, i32
  }
}

</mosaic_0001>

<llo_original>
// kernel: tpu_custom_call.1
$region0: #{tpu_custom_call.1}
  #allocation0 [shape = 'u32[]', space=smem, size = 0x4, offset = 0x4, fixed_abs, tag = 'smem constant byte address 0x4 - core index']
  #allocation1 [shape = 'u32[144,128]{1,0:T(1,128)}', space=vmem, size = 0x12000, scoped, tag = 'internal scratch']
  %s0 = inlined_call_operand.vmem [shape: f32[64,16], index: 0, kind: input, shape index: {}]
  %s1 = inlined_call_operand.hbm [shape: f32[1,16,4096], index: 1, kind: input, shape index: {}]
  %s2 = inlined_call_operand.hbm [shape: f32[1,64,4096], index: 2, kind: output, shape index: {}]
  %s3 = sld [smem:[#allocation0]]
  $region45: #{tpu_custom_call.1} parent=0
    _
  %s5 = ssub.s32 1, %s3
  %s6 = scalar_select 0, %s5, %s3
  $region1: #{tpu_custom_call.1} parent=0
    #allocation2 [shape = 'u8[262144]{0}', space=vmem, size = 0x40000, scoped, tag = 'input window, operand 1']
    #allocation3 [shape = 's32[2]{0}', space=sflag, size = 0x8, scoped, tag = 'scoped memory for tpu_custom_call.1']
    #allocation4 [shape = 's32[2]{0}', space=sflag, size = 0x8, scoped, tag = 'scoped memory for tpu_custom_call.1']
    #allocation5 [shape = 'u8[1048576]{0}', space=vmem, size = 0x100000, scoped, tag = 'output window, operand 0']
    %7 = vsyncpa [#allocation3], 0
    %s8 = scalar_lea.sflag [#allocation3], 1
    %9 = vsyncpa %s8, 0
    %10 = vsyncpa [#allocation4], 0
    %s11 = scalar_lea.sflag [#allocation4], 1
    %12 = vsyncpa %s11, 0
    loop: start=0, step=1, limit=4
    $region2: #{tpu_custom_call.1} parent=1 // loop_pre_header
      _
    $region3: #{tpu_custom_call.1} parent=1 // loop_header
      %s14 = sphi 0, %s18
      %p15 = scmp.ge.s32.totalorder %s14, 4
      %s21 = sphi 0, %s33
      %s22 = sphi 0, %s29
      %s23 = sphi 0, %s21
      %s24 = sphi 0, %s22
      %s25 = sphi 0, %s23
      %s26 = sphi 0, %s24
      %s34 = sphi 0, %s34
      %s36 = sphi 0, %s34
      %s37 = sphi 0, %s36
      %s51 = sphi 0, %s37
      %s59 = sphi 0, %s61
      %s62 = sphi 0, %s59
      %s63 = sphi 0, %s62
      %s79 = sphi 0, %s63
      %s87 = sphi 0, %s89
      %s90 = sphi 0, %s87
      %s91 = sphi 0, %s90
      %s107 = sphi 0, %s91
    $region4: #{tpu_custom_call.1} parent=1 // loop_header_branch
      %17 = sbr.rel (%p15) target = $region8
    $region5: #{tpu_custom_call.1} parent=1 // loop_body
      %s19 = ssub.s32 %s14, 1
      %s20 = ssub.s32 %s14, 2
      %s27 = sadd.s32 1, %s22
      %p28 = scmp.ge.s32.totalorder %s27, 2
      %s29 = scalar_select %p28, 0, %s27
      %s30 = sadd.s32 1, %s21
      %s31 = scalar_select %p28, %s30, %s21
      %p32 = scmp.ge.s32.totalorder %s31, 1
      %s33 = scalar_select %p32, 0, %s31
      %s35 = sadd.s32 %s34, 1
      %p38 = scmp.eq.s32.totalorder %s14, 1
      %p39 = scmp.ne.s32.totalorder %s34, %s36
      %p40 = scmp.eq.s32.totalorder %s14, 0
      %p41 = por %p39, %p40
      %p42 = scmp.ne.s32.totalorder %s34, %s36
      %p43 = scmp.eq.s32.totalorder %s19, 1
      %p44 = por %p42, %p43
      %p45 = scmp.ne.s32.totalorder %s36, %s37
      %p46 = scmp.eq.s32.totalorder %s19, 0
      %p47 = por %p45, %p46
      %p48 = scmp.ne.s32.totalorder %s36, %s37
      %p49 = scmp.eq.s32.totalorder %s20, 1
      %p50 = por %p48, %p49
      %p52 = scmp.ne.s32.totalorder %s37, %s51
      %p53 = scmp.eq.s32.totalorder %s20, 0
      %p54 = por %p52, %p53
      %s55 = ssub.s32 %s21, %s33
      %s56 = ssub.s32 %s22, %s29
      %s57 = sor.u32 %s55, %s56
      %p58 = scmp.eq.s32.totalorder %s57, 0
      %s60 = sadd.s32 %s59, 1
      %s61 = scalar_select %p58, %s59, %s60
      %p64 = pneg %p58
      %p65 = scmp.eq.s32.totalorder %s14, 1
      %p66 = por %p64, %p65
      %p67 = scmp.ne.s32.totalorder %s59, %s62
      %p68 = scmp.eq.s32.totalorder %s14, 0
      %p69 = por %p67, %p68
      %p70 = scmp.ne.s32.totalorder %s59, %s62
      %p71 = scmp.eq.s32.totalorder %s19, 1
      %p72 = por %p70, %p71
      %p73 = scmp.ne.s32.totalorder %s62, %s63
      %p74 = scmp.eq.s32.totalorder %s19, 0
      %p75 = por %p73, %p74
      %p76 = scmp.ne.s32.totalorder %s62, %s63
      %p77 = scmp.eq.s32.totalorder %s20, 1
      %p78 = por %p76, %p77
      %p80 = scmp.ne.s32.totalorder %s63, %s79
      %p81 = scmp.eq.s32.totalorder %s20, 0
      %p82 = por %p80, %p81
      %s83 = ssub.s32 %s21, %s33
      %s84 = ssub.s32 %s22, %s29
      %s85 = sor.u32 %s83, %s84
      %p86 = scmp.eq.s32.totalorder %s85, 0
      %s88 = sadd.s32 %s87, 1
      %s89 = scalar_select %p86, %s87, %s88
      %p92 = pneg %p86
      %p93 = scmp.eq.s32.totalorder %s14, 1
      %p94 = por %p92, %p93
      %p95 = scmp.ne.s32.totalorder %s87, %s90
      %p96 = scmp.eq.s32.totalorder %s14, 0
      %p97 = por %p95, %p96
      %p98 = scmp.ne.s32.totalorder %s87, %s90
      %p99 = scmp.eq.s32.totalorder %s19, 1
      %p100 = por %p98, %p99
      %p101 = scmp.ne.s32.totalorder %s90, %s91
      %p102 = scmp.eq.s32.totalorder %s19, 0
      %p103 = por %p101, %p102
      %p104 = scmp.ne.s32.totalorder %s90, %s91
      %p105 = scmp.eq.s32.totalorder %s20, 1
      %p106 = por %p104, %p105
      %p108 = scmp.ne.s32.totalorder %s91, %s107
      %p109 = scmp.eq.s32.totalorder %s20, 0
      %p110 = por %p108, %p109
      %p111 = scmp.le.s32.totalorder 1, %s14
      %p112 = scmp.lt.s32.totalorder %s14, 3
      %p113 = pnand %p111, %p112
      %p114 = pneg %p113
      // Predicated region
      $region9: #{tpu_custom_call.1} parent=5 // pred_check
        _
      $region10: #{tpu_custom_call.1} parent=5 // pred_check_branch
        %116 = sbr.rel (%p113) target = $region12
      $region11: #{tpu_custom_call.1} parent=5 // pred_region
        %s117 = ssub.s32 %s14, 1
        // Predicated region
        $region13: #{tpu_custom_call.1} parent=11 // pred_check
          %p118 = pneg %p47
        $region14: #{tpu_custom_call.1} parent=11 // pred_check_branch
          %120 = sbr.rel (%p118) target = $region16
        $region15: #{tpu_custom_call.1} parent=11 // pred_region
          _
        $region16: #{tpu_custom_call.1} parent=11 // pred_fallthru
          _
      $region12: #{tpu_custom_call.1} parent=5 // pred_fallthru
        _
      %p121 = scmp.lt.s32.totalorder %s14, 2
      // Predicated region
      $region17: #{tpu_custom_call.1} parent=5 // pred_check
        %p122 = pneg %p121
      $region18: #{tpu_custom_call.1} parent=5 // pred_check_branch
        %124 = sbr.rel (%p122) target = $region20
      $region19: #{tpu_custom_call.1} parent=5 // pred_region
        // Predicated region
        $region21: #{tpu_custom_call.1} parent=19 // pred_check
          %p125 = pneg %p69
        $region22: #{tpu_custom_call.1} parent=19 // pred_check_branch
          %127 = sbr.rel (%p125) target = $region24
        $region23: #{tpu_custom_call.1} parent=19 // pred_region
          %s128 = sand.u32 %s59, 1
          %s129 = scalar_lea.sflag [#allocation3], %s128
          %s130 = sand.u32 %s59, 1
          %s131 = smul.addr %s130, 256
          %s132 = scalar_lea.vmem [#allocation2], %s131
          %s133 = smul.u32 16, %s22
          %s135 = ssub.s32 4096, 4096
          %136 = vsyncadd %s129, %s135
          %s137 = smul.addr %s21, 64
          %s138 = sadd.s32 %s133, %s137
          %s139 = smul.addr %s138, 128
          %s140 = scalar_lea.hbm %s1, %s139
          %s141 = sshll.u32 %s132, 4
          %s142 = int_to_ptr.vmem [resolvable:$true] %s141
          %147 = dma.hbm_to_vmem [thread:$0]  %s140, 4096, %s142, %s129, 4096, 2048, 128
        $region24: #{tpu_custom_call.1} parent=19 // pred_fallthru
          _
      $region20: #{tpu_custom_call.1} parent=5 // pred_fallthru
        _
      %p148 = scmp.le.s32.totalorder 1, %s14
      %p149 = scmp.lt.s32.totalorder %s14, 3
      %p150 = pnand %p148, %p149
      %p151 = pneg %p150
      // Predicated region
      $region25: #{tpu_custom_call.1} parent=5 // pred_check
        _
      $region26: #{tpu_custom_call.1} parent=5 // pred_check_branch
        %153 = sbr.rel (%p150) target = $region28
      $region27: #{tpu_custom_call.1} parent=5 // pred_region
        %s154 = ssub.s32 %s14, 1
        %s155 = sand.u32 %s62, 1
        %s156 = scalar_lea.sflag [#allocation3], %s155
        %s157 = sand.u32 %s62, 1
        %s158 = smul.addr %s157, 256
        %s159 = scalar_lea.vmem [#allocation2], %s158
        // Predicated region
        $region29: #{tpu_custom_call.1} parent=27 // pred_check
          %p160 = pneg %p75
        $region30: #{tpu_custom_call.1} parent=27 // pred_check_branch
          %162 = sbr.rel (%p160) target = $region32
        $region31: #{tpu_custom_call.1} parent=27 // pred_region
          %163 = dma.done %s156, 4096
        $region32: #{tpu_custom_call.1} parent=27 // pred_fallthru
          _
        %p164 = pneg %p47
        %p165 = pneg %p44
        %s166 = sand.u32 %s62, 1
        %s167 = scalar_lea.sflag [#allocation3], %s166
        %s168 = sand.u32 %s62, 1
        %s169 = smul.addr %s168, 256
        %s170 = scalar_lea.vmem [#allocation2], %s169
        %p171 = pneg %p75
        %p172 = pneg %p72
        %p173 = pneg %p103
        %p174 = pneg %p100
        %s175 = sand.u32 %s90, 1
        %s176 = scalar_lea.sflag [#allocation4], %s175
        %s177 = sand.u32 %s90, 1
        %s178 = smul.addr %s177, 1024
        %s179 = scalar_lea.vmem [#allocation5], %s178
        %s180 = smul.u32 16, %s24
        %s181 = smul.u32 16, %s24
        %v182 = vld [vmem:[%s0] sm:$0xff]
        %v183 = vld [vmem:[%s0 + $0x8] sm:$0xff]
        %v184 = vld [vmem:[%s0 + $0x10] sm:$0xff]
        %v185 = vld [vmem:[%s0 + $0x18] sm:$0xff]
        %v186 = vld [vmem:[%s0 + $0x20] sm:$0xff]
        %v187 = vld [vmem:[%s0 + $0x28] sm:$0xff]
        %v188 = vld [vmem:[%s0 + $0x30] sm:$0xff]
        %v189 = vld [vmem:[%s0 + $0x38] sm:$0xff]
        %v190 = vld [vmem:[%s159] sm:$0xff]
        %v191 = vld [vmem:[%s159 + $0x8] sm:$0xff]
        %v192 = vld [vmem:[%s159 + $0x10] sm:$0xff]
        %v193 = vld [vmem:[%s159 + $0x18] sm:$0xff]
        %v194 = vld [vmem:[%s159 + $0x20] sm:$0xff]
        %v195 = vld [vmem:[%s159 + $0x28] sm:$0xff]
        %v196 = vld [vmem:[%s159 + $0x30] sm:$0xff]
        %v197 = vld [vmem:[%s159 + $0x38] sm:$0xff]
        %v198 = vld [vmem:[%s159 + $0x40] sm:$0xff]
        %v199 = vld [vmem:[%s159 + $0x48] sm:$0xff]
        %v200 = vld [vmem:[%s159 + $0x50] sm:$0xff]
        %v201 = vld [vmem:[%s159 + $0x58] sm:$0xff]
        %v202 = vld [vmem:[%s159 + $0x60] sm:$0xff]
        %v203 = vld [vmem:[%s159 + $0x68] sm:$0xff]
        %v204 = vld [vmem:[%s159 + $0x70] sm:$0xff]
        %v205 = vld [vmem:[%s159 + $0x78] sm:$0xff]
        %v206 = vld [vmem:[%s159 + $0x80] sm:$0xff]
        %v207 = vld [vmem:[%s159 + $0x88] sm:$0xff]
        %v208 = vld [vmem:[%s159 + $0x90] sm:$0xff]
        %v209 = vld [vmem:[%s159 + $0x98] sm:$0xff]
        %v210 = vld [vmem:[%s159 + $0xa0] sm:$0xff]
        %v211 = vld [vmem:[%s159 + $0xa8] sm:$0xff]
        %v212 = vld [vmem:[%s159 + $0xb0] sm:$0xff]
        %v213 = vld [vmem:[%s159 + $0xb8] sm:$0xff]
        %v214 = vld [vmem:[%s159 + $0xc0] sm:$0xff]
        %v215 = vld [vmem:[%s159 + $0xc8] sm:$0xff]
        %v216 = vld [vmem:[%s159 + $0xd0] sm:$0xff]
        %v217 = vld [vmem:[%s159 + $0xd8] sm:$0xff]
        %v218 = vld [vmem:[%s159 + $0xe0] sm:$0xff]
        %v219 = vld [vmem:[%s159 + $0xe8] sm:$0xff]
        %v220 = vld [vmem:[%s159 + $0xf0] sm:$0xff]
        %v221 = vld [vmem:[%s159 + $0xf8] sm:$0xff]
        %vm222 = vcmask 130048
        %v224 = vsel %vm222, %v182, 0
        %v227 = vsel %vm222, %v183, 0
        %v230 = vsel %vm222, %v184, 0
        %v233 = vsel %vm222, %v185, 0
        %v236 = vsel %vm222, %v186, 0
        %v239 = vsel %vm222, %v187, 0
        %v242 = vsel %vm222, %v188, 0
        %v245 = vsel %vm222, %v189, 0
        %247 = vmatprep.subr.mxu0 %v191
        %248 = vmatpush1.msra.mxu0 %v190
        %249 = vmatprep.subr.mxu0 %v207
        %250 = vmatpush1.msra.mxu0 %v206
        %251 = vmatprep.subr.mxu0 0.0
        %252 = vmatpush1.msra.mxu0 0.0
        %253 = vmatprep.subr.mxu0 0.0
        %254 = vmatpush1.msra.mxu0 0.0
        %255 = vmatprep.subr.mxu0 0.0
        %256 = vmatpush1.msra.mxu0 0.0
        %257 = vmatprep.subr.mxu0 0.0
        %258 = vmatpush1.msra.mxu0 0.0
        %259 = vmatprep.subr.mxu0 0.0
        %260 = vmatpush1.msra.mxu0 0.0
        %261 = vmatprep.subr.mxu0 0.0
        %262 = vmatpush1.msra.mxu0 0.0
        %263 = vmatprep.subr.mxu0 0.0
        %264 = vmatpush1.msra.mxu0 0.0
        %265 = vmatprep.subr.mxu0 0.0
        %266 = vmatpush1.msra.mxu0 0.0
        %267 = vmatprep.subr.mxu0 0.0
        %268 = vmatpush1.msra.mxu0 0.0
        %269 = vmatprep.subr.mxu0 0.0
        %270 = vmatpush1.msra.mxu0 0.0
        %271 = vmatprep.subr.mxu0 0.0
        %272 = vmatpush1.msra.mxu0 0.0
        %273 = vmatprep.subr.mxu0 0.0
        %274 = vmatpush1.msra.mxu0 0.0
        %275 = vmatprep.subr.mxu0 0.0
        %276 = vmatpush1.msra.mxu0 0.0
        %277 = vmatprep.subr.mxu0 0.0
        %278 = vmatpush1.msra.mxu0 0.0
        %279 = vmatprep.subr.mxu0 0.0
        %280 = vmatpush1.msra.mxu0 0.0
        %281 = vmatprep.subr.mxu0 0.0
        %282 = vmatpush1.msra.mxu0 0.0
        %283 = vmatprep.subr.mxu0 0.0
        %284 = vmatpush1.msra.mxu0 0.0
        %285 = vmatprep.subr.mxu0 0.0
        %286 = vmatpush1.msra.mxu0 0.0
        %287 = vmatprep.subr.mxu0 0.0
        %288 = vmatpush1.msra.mxu0 0.0
        %289 = vmatprep.subr.mxu0 0.0
        %290 = vmatpush1.msra.mxu0 0.0
        %291 = vmatprep.subr.mxu0 0.0
        %292 = vmatpush1.msra.mxu0 0.0
        %293 = vmatprep.subr.mxu0 0.0
        %294 = vmatpush1.msra.mxu0 0.0
        %295 = vmatprep.subr.mxu0 0.0
        %296 = vmatpush1.msra.mxu0 0.0
        %297 = vmatprep.subr.mxu0 0.0
        %298 = vmatpush1.msra.mxu0 0.0
        %299 = vmatprep.subr.mxu0 0.0
        %300 = vmatpush1.msra.mxu0 0.0
        %301 = vmatprep.subr.mxu0 0.0
        %302 = vmatpush1.msra.mxu0 0.0
        %303 = vmatprep.subr.mxu0 0.0
        %304 = vmatpush1.msra.mxu0 0.0
        %305 = vmatprep.subr.mxu0 0.0
        %306 = vmatpush1.msra.mxu0 0.0
        %307 = vmatprep.subr.mxu0 0.0
        %308 = vmatpush1.msra.mxu0 0.0
        %309 = vmatprep.subr.mxu0 0.0
        %310 = vmatpush1.msra.mxu0 0.0
        %311 = vmatprep.mubr.f32.mxu0 0.0
        %312 = vmatmul.mubr.f32.gmra.mrb[0].mxu0 %v224
        %v313 = vpop.f32.mrb[0].mxu0
        %v314 = vadd.f32 0.0, %v313
        %v315 = vpop.f32.mrb[0].mxu0
        %v316 = vadd.f32 0.0, %v315
        %317 = vmatprep.mubr.f32.mxu0 0.0
        %318 = vmatmul.mubr.f32.gmra.mrb[0].mxu0 %v227
        %v319 = vpop.f32.mrb[0].mxu0
        %v320 = vadd.f32 0.0, %v319
        %v321 = vpop.f32.mrb[0].mxu0
        %v322 = vadd.f32 0.0, %v321
        %323 = vmatprep.mubr.f32.mxu0 0.0
        %324 = vmatmul.mubr.f32.gmra.mrb[0].mxu0 %v230
        %v325 = vpop.f32.mrb[0].mxu0
        %v326 = vadd.f32 0.0, %v325
        %v327 = vpop.f32.mrb[0].mxu0
        %v328 = vadd.f32 0.0, %v327
        %329 = vmatprep.mubr.f32.mxu0 0.0
        %330 = vmatmul.mubr.f32.gmra.mrb[0].mxu0 %v233
        %v331 = vpop.f32.mrb[0].mxu0
        %v332 = vadd.f32 0.0, %v331
        %v333 = vpop.f32.mrb[0].mxu0
        %v334 = vadd.f32 0.0, %v333
        %335 = vmatprep.mubr.f32.mxu0 0.0
        %336 = vmatmul.mubr.f32.gmra.mrb[0].mxu0 %v236
        %v337 = vpop.f32.mrb[0].mxu0
        %v338 = vadd.f32 0.0, %v337
        %v339 = vpop.f32.mrb[0].mxu0
        %v340 = vadd.f32 0.0, %v339
        %341 = vmatprep.mubr.f32.mxu0 0.0
        %342 = vmatmul.mubr.f32.gmra.mrb[0].mxu0 %v239
        %v343 = vpop.f32.mrb[0].mxu0
        %v344 = vadd.f32 0.0, %v343
        %v345 = vpop.f32.mrb[0].mxu0
        %v346 = vadd.f32 0.0, %v345
        %347 = vmatprep.mubr.f32.mxu0 0.0
        %348 = vmatmul.mubr.f32.gmra.mrb[0].mxu0 %v242
        %v349 = vpop.f32.mrb[0].mxu0
        %v350 = vadd.f32 0.0, %v349
        %v351 = vpop.f32.mrb[0].mxu0
        %v352 = vadd.f32 0.0, %v351
        %353 = vmatprep.mubr.f32.mxu0 0.0
        %354 = vmatmul.mubr.f32.gmra.mrb[0].mxu0 %v245
        %v355 = vpop.f32.mrb[0].mxu0
        %v356 = vadd.f32 0.0, %v355
        %v357 = vpop.f32.mrb[0].mxu0
        %v358 = vadd.f32 0.0, %v357
        %359 = vdwg.mxu0
        %360 = vmatprep.subr.mxu0 %v193
        %361 = vmatpush1.msra.mxu0 %v192
        %362 = vmatprep.subr.mxu0 %v209
        %363 = vmatpush1.msra.mxu0 %v208
        %364 = vmatprep.subr.mxu0 0.0
        %365 = vmatpush1.msra.mxu0 0.0
        %366 = vmatprep.subr.mxu0 0.0
        %367 = vmatpush1.msra.mxu0 0.0
        %368 = vmatprep.subr.mxu0 0.0
        %369 = vmatpush1.msra.mxu0 0.0
        %370 = vmatprep.subr.mxu0 0.0
        %371 = vmatpush1.msra.mxu0 0.0
        %372 = vmatprep.subr.mxu0 0.0
        %373 = vmatpush1.msra.mxu0 0.0
        %374 = vmatprep.subr.mxu0 0.0
        %375 = vmatpush1.msra.mxu0 0.0
        %376 = vmatprep.subr.mxu0 0.0
        %377 = vmatpush1.msra.mxu0 0.0
        %378 = vmatprep.subr.mxu0 0.0
        %379 = vmatpush1.msra.mxu0 0.0
        %380 = vmatprep.subr.mxu0 0.0
        %381 = vmatpush1.msra.mxu0 0.0
        %382 = vmatprep.subr.mxu0 0.0
        %383 = vmatpush1.msra.mxu0 0.0
        %384 = vmatprep.subr.mxu0 0.0
        %385 = vmatpush1.msra.mxu0 0.0
        %386 = vmatprep.subr.mxu0 0.0
        %387 = vmatpush1.msra.mxu0 0.0
        %388 = vmatprep.subr.mxu0 0.0
        %389 = vmatpush1.msra.mxu0 0.0
        %390 = vmatprep.subr.mxu0 0.0
        %391 = vmatpush1.msra.mxu0 0.0
        %392 = vmatprep.subr.mxu0 0.0
        %393 = vmatpush1.msra.mxu0 0.0
        %394 = vmatprep.subr.mxu0 0.0
        %395 = vmatpush1.msra.mxu0 0.0
        %396 = vmatprep.subr.mxu0 0.0
        %397 = vmatpush1.msra.mxu0 0.0
        %398 = vmatprep.subr.mxu0 0.0
        %399 = vmatpush1.msra.mxu0 0.0
        %400 = vmatprep.subr.mxu0 0.0
        %401 = vmatpush1.msra.mxu0 0.0
        %402 = vmatprep.subr.mxu0 0.0
        %403 = vmatpush1.msra.mxu0 0.0
        %404 = vmatprep.subr.mxu0 0.0
        %405 = vmatpush1.msra.mxu0 0.0
        %406 = vmatprep.subr.mxu0 0.0
        %407 = vmatpush1.msra.mxu0 0.0
        %408 = vmatprep.subr.mxu0 0.0
        %409 = vmatpush1.msra.mxu0 0.0
        %410 = vmatprep.subr.mxu0 0.0
        %411 = vmatpush1.msra.mxu0 0.0
        %412 = vmatprep.subr.mxu0 0.0
        %413 = vmatpush1.msra.mxu0 0.0
        %414 = vmatprep.subr.mxu0 0.0
        %415 = vmatpush1.msra.mxu0 0.0
        %416 = vmatprep.subr.mxu0 0.0
        %417 = vmatpush1.msra.mxu0 0.0
        %418 = vmatprep.subr.mxu0 0.0
        %419 = vmatpush1.msra.mxu0 0.0
        %420 = vmatprep.subr.mxu0 0.0
        %421 = vmatpush1.msra.mxu0 0.0
        %422 = vmatprep.subr.mxu0 0.0
        %423 = vmatpush1.msra.mxu0 0.0
        %424 = vmatprep.mubr.f32.mxu0 0.0
        %425 = vmatmul.mubr.f32.gmra.mrb[0].mxu0 %v224
        %v426 = vpop.f32.mrb[0].mxu0
        %v427 = vadd.f32 0.0, %v426
        %v428 = vpop.f32.mrb[0].mxu0
        %v429 = vadd.f32 0.0, %v428
        %430 = vmatprep.mubr.f32.mxu0 0.0
        %431 = vmatmul.mubr.f32.gmra.mrb[0].mxu0 %v227
        %v432 = vpop.f32.mrb[0].mxu0
        %v433 = vadd.f32 0.0, %v432
        %v434 = vpop.f32.mrb[0].mxu0
        %v435 = vadd.f32 0.0, %v434
        %436 = vmatprep.mubr.f32.mxu0 0.0
        %437 = vmatmul.mubr.f32.gmra.mrb[0].mxu0 %v230
        %v438 = vpop.f32.mrb[0].mxu0
        %v439 = vadd.f32 0.0, %v438
        %v440 = vpop.f32.mrb[0].mxu0
        %v441 = vadd.f32 0.0, %v440
        %442 = vmatprep.mubr.f32.mxu0 0.0
        %443 = vmatmul.mubr.f32.gmra.mrb[0].mxu0 %v233
        %v444 = vpop.f32.mrb[0].mxu0
        %v445 = vadd.f32 0.0, %v444
        %v446 = vpop.f32.mrb[0].mxu0
        %v447 = vadd.f32 0.0, %v446
        %448 = vmatprep.mubr.f32.mxu0 0.0
        %449 = vmatmul.mubr.f32.gmra.mrb[0].mxu0 %v236
        %v450 = vpop.f32.mrb[0].mxu0
        %v451 = vadd.f32 0.0, %v450
        %v452 = vpop.f32.mrb[0].mxu0
        %v453 = vadd.f32 0.0, %v452
        %454 = vmatprep.mubr.f32.mxu0 0.0
        %455 = vmatmul.mubr.f32.gmra.mrb[0].mxu0 %v239
        %v456 = vpop.f32.mrb[0].mxu0
        %v457 = vadd.f32 0.0, %v456
        %v458 = vpop.f32.mrb[0].mxu0
        %v459 = vadd.f32 0.0, %v458
        %460 = vmatprep.mubr.f32.mxu0 0.0
        %461 = vmatmul.mubr.f32.gmra.mrb[0].mxu0 %v242
        %v462 = vpop.f32.mrb[0].mxu0
        %v463 = vadd.f32 0.0, %v462
        %v464 = vpop.f32.mrb[0].mxu0
        %v465 = vadd.f32 0.0, %v464
        %466 = vmatprep.mubr.f32.mxu0 0.0
        %467 = vmatmul.mubr.f32.gmra.mrb[0].mxu0 %v245
        %v468 = vpop.f32.mrb[0].mxu0
        %v469 = vadd.f32 0.0, %v468
        %v470 = vpop.f32.mrb[0].mxu0
        %v471 = vadd.f32 0.0, %v470
        %472 = vdwg.mxu0
        %473 = vmatprep.subr.mxu0 %v195
        %474 = vmatpush1.msra.mxu0 %v194
        %475 = vmatprep.subr.mxu0 %v211
        %476 = vmatpush1.msra.mxu0 %v210
        %477 = vmatprep.subr.mxu0 0.0
        %478 = vmatpush1.msra.mxu0 0.0
        %479 = vmatprep.subr.mxu0 0.0
        %480 = vmatpush1.msra.mxu0 0.0
        %481 = vmatprep.subr.mxu0 0.0
        %482 = vmatpush1.msra.mxu0 0.0
        %483 = vmatprep.subr.mxu0 0.0
        %484 = vmatpush1.msra.mxu0 0.0
        %485 = vmatprep.subr.mxu0 0.0
        %486 = vmatpush1.msra.mxu0 0.0
        %487 = vmatprep.subr.mxu0 0.0
        %488 = vmatpush1.msra.mxu0 0.0
        %489 = vmatprep.subr.mxu0 0.0
        %490 = vmatpush1.msra.mxu0 0.0
        %491 = vmatprep.subr.mxu0 0.0
        %492 = vmatpush1.msra.mxu0 0.0
        %493 = vmatprep.subr.mxu0 0.0
        %494 = vmatpush1.msra.mxu0 0.0
        %495 = vmatprep.subr.mxu0 0.0
        %496 = vmatpush1.msra.mxu0 0.0
        %497 = vmatprep.subr.mxu0 0.0
        %498 = vmatpush1.msra.mxu0 0.0
        %499 = vmatprep.subr.mxu0 0.0
        %500 = vmatpush1.msra.mxu0 0.0
        %501 = vmatprep.subr.mxu0 0.0
        %502 = vmatpush1.msra.mxu0 0.0
        %503 = vmatprep.subr.mxu0 0.0
        %504 = vmatpush1.msra.mxu0 0.0
        %505 = vmatprep.subr.mxu0 0.0
        %506 = vmatpush1.msra.mxu0 0.0
        %507 = vmatprep.subr.mxu0 0.0
        %508 = vmatpush1.msra.mxu0 0.0
        %509 = vmatprep.subr.mxu0 0.0
        %510 = vmatpush1.msra.mxu0 0.0
        %511 = vmatprep.subr.mxu0 0.0
        %512 = vmatpush1.msra.mxu0 0.0
        %513 = vmatprep.subr.mxu0 0.0
        %514 = vmatpush1.msra.mxu0 0.0
        %515 = vmatprep.subr.mxu0 0.0
        %516 = vmatpush1.msra.mxu0 0.0
        %517 = vmatprep.subr.mxu0 0.0
        %518 = vmatpush1.msra.mxu0 0.0
        %519 = vmatprep.subr.mxu0 0.0
        %520 = vmatpush1.msra.mxu0 0.0
        %521 = vmatprep.subr.mxu0 0.0
        %522 = vmatpush1.msra.mxu0 0.0
        %523 = vmatprep.subr.mxu0 0.0
        %524 = vmatpush1.msra.mxu0 0.0
        %525 = vmatprep.subr.mxu0 0.0
        %526 = vmatpush1.msra.mxu0 0.0
        %527 = vmatprep.subr.mxu0 0.0
        %528 = vmatpush1.msra.mxu0 0.0
        %529 = vmatprep.subr.mxu0 0.0
        %530 = vmatpush1.msra.mxu0 0.0
        %531 = vmatprep.subr.mxu0 0.0
        %532 = vmatpush1.msra.mxu0 0.0
        %533 = vmatprep.subr.mxu0 0.0
        %534 = vmatpush1.msra.mxu0 0.0
        %535 = vmatprep.subr.mxu0 0.0
        %536 = vmatpush1.msra.mxu0 0.0
        %537 = vmatprep.mubr.f32.mxu0 0.0
        %538 = vmatmul.mubr.f32.gmra.mrb[0].mxu0 %v224
        %v539 = vpop.f32.mrb[0].mxu0
        %v540 = vadd.f32 0.0, %v539
        %v541 = vpop.f32.mrb[0].mxu0
        %v542 = vadd.f32 0.0, %v541
        %543 = vmatprep.mubr.f32.mxu0 0.0
        %544 = vmatmul.mubr.f32.gmra.mrb[0].mxu0 %v227
        %v545 = vpop.f32.mrb[0].mxu0
        %v546 = vadd.f32 0.0, %v545
        %v547 = vpop.f32.mrb[0].mxu0
        %v548 = vadd.f32 0.0, %v547
        %549 = vmatprep.mubr.f32.mxu0 0.0
        %550 = vmatmul.mubr.f32.gmra.mrb[0].mxu0 %v230
        %v551 = vpop.f32.mrb[0].mxu0
        %v552 = vadd.f32 0.0, %v551
        %v553 = vpop.f32.mrb[0].mxu0
        %v554 = vadd.f32 0.0, %v553
        %555 = vmatprep.mubr.f32.mxu0 0.0
        %556 = vmatmul.mubr.f32.gmra.mrb[0].mxu0 %v233
        %v557 = vpop.f32.mrb[0].mxu0
        %v558 = vadd.f32 0.0, %v557
        %v559 = vpop.f32.mrb[0].mxu0
        %v560 = vadd.f32 0.0, %v559
        %561 = vmatprep.mubr.f32.mxu0 0.0
        %562 = vmatmul.mubr.f32.gmra.mrb[0].mxu0 %v236
        %v563 = vpop.f32.mrb[0].mxu0
        %v564 = vadd.f32 0.0, %v563
        %v565 = vpop.f32.mrb[0].mxu0
        %v566 = vadd.f32 0.0, %v565
        %567 = vmatprep.mubr.f32.mxu0 0.0
        %568 = vmatmul.mubr.f32.gmra.mrb[0].mxu0 %v239
        %v569 = vpop.f32.mrb[0].mxu0
        %v570 = vadd.f32 0.0, %v569
        %v571 = vpop.f32.mrb[0].mxu0
        %v572 = vadd.f32 0.0, %v571
        %573 = vmatprep.mubr.f32.mxu0 0.0
        %574 = vmatmul.mubr.f32.gmra.mrb[0].mxu0 %v242
        %v575 = vpop.f32.mrb[0].mxu0
        %v576 = vadd.f32 0.0, %v575
        %v577 = vpop.f32.mrb[0].mxu0
        %v578 = vadd.f32 0.0, %v577
        %579 = vmatprep.mubr.f32.mxu0 0.0
        %580 = vmatmul.mubr.f32.gmra.mrb[0].mxu0 %v245
        %v581 = vpop.f32.mrb[0].mxu0
        %v582 = vadd.f32 0.0, %v581
        %v583 = vpop.f32.mrb[0].mxu0
        %v584 = vadd.f32 0.0, %v583
        %585 = vdwg.mxu0
        %586 = vmatprep.subr.mxu0 %v197
        %587 = vmatpush1.msra.mxu0 %v196
        %588 = vmatprep.subr.mxu0 %v213
        %589 = vmatpush1.msra.mxu0 %v212
        %590 = vmatprep.subr.mxu0 0.0
        %591 = vmatpush1.msra.mxu0 0.0
        %592 = vmatprep.subr.mxu0 0.0
        %593 = vmatpush1.msra.mxu0 0.0
        %594 = vmatprep.subr.mxu0 0.0
        %595 = vmatpush1.msra.mxu0 0.0
        %596 = vmatprep.subr.mxu0 0.0
        %597 = vmatpush1.msra.mxu0 0.0
        %598 = vmatprep.subr.mxu0 0.0
        %599 = vmatpush1.msra.mxu0 0.0
        %600 = vmatprep.subr.mxu0 0.0
        %601 = vmatpush1.msra.mxu0 0.0
        %602 = vmatprep.subr.mxu0 0.0
        %603 = vmatpush1.msra.mxu0 0.0
        %604 = vmatprep.subr.mxu0 0.0
        %605 = vmatpush1.msra.mxu0 0.0
        %606 = vmatprep.subr.mxu0 0.0
        %607 = vmatpush1.msra.mxu0 0.0
        %608 = vmatprep.subr.mxu0 0.0
        %609 = vmatpush1.msra.mxu0 0.0
        %610 = vmatprep.subr.mxu0 0.0
        %611 = vmatpush1.msra.mxu0 0.0
        %612 = vmatprep.subr.mxu0 0.0
        %613 = vmatpush1.msra.mxu0 0.0
        %614 = vmatprep.subr.mxu0 0.0
        %615 = vmatpush1.msra.mxu0 0.0
        %616 = vmatprep.subr.mxu0 0.0
        %617 = vmatpush1.msra.mxu0 0.0
        %618 = vmatprep.subr.mxu0 0.0
        %619 = vmatpush1.msra.mxu0 0.0
        %620 = vmatprep.subr.mxu0 0.0
        %621 = vmatpush1.msra.mxu0 0.0
        %622 = vmatprep.subr.mxu0 0.0
        %623 = vmatpush1.msra.mxu0 0.0
        %624 = vmatprep.subr.mxu0 0.0
        %625 = vmatpush1.msra.mxu0 0.0
        %626 = vmatprep.subr.mxu0 0.0
        %627 = vmatpush1.msra.mxu0 0.0
        %628 = vmatprep.subr.mxu0 0.0
        %629 = vmatpush1.msra.mxu0 0.0
        %630 = vmatprep.subr.mxu0 0.0
        %631 = vmatpush1.msra.mxu0 0.0
        %632 = vmatprep.subr.mxu0 0.0
        %633 = vmatpush1.msra.mxu0 0.0
        %634 = vmatprep.subr.mxu0 0.0
        %635 = vmatpush1.msra.mxu0 0.0
        %636 = vmatprep.subr.mxu0 0.0
        %637 = vmatpush1.msra.mxu0 0.0
        %638 = vmatprep.subr.mxu0 0.0
        %639 = vmatpush1.msra.mxu0 0.0
        %640 = vmatprep.subr.mxu0 0.0
        %641 = vmatpush1.msra.mxu0 0.0
        %642 = vmatprep.subr.mxu0 0.0
        %643 = vmatpush1.msra.mxu0 0.0
        %644 = vmatprep.subr.mxu0 0.0
        %645 = vmatpush1.msra.mxu0 0.0
        %646 = vmatprep.subr.mxu0 0.0
        %647 = vmatpush1.msra.mxu0 0.0
        %648 = vmatprep.subr.mxu0 0.0
        %649 = vmatpush1.msra.mxu0 0.0
        %650 = vmatprep.mubr.f32.mxu0 0.0
        %651 = vmatmul.mubr.f32.gmra.mrb[0].mxu0 %v224
        %v652 = vpop.f32.mrb[0].mxu0
        %v653 = vadd.f32 0.0, %v652
        %v654 = vpop.f32.mrb[0].mxu0
        %v655 = vadd.f32 0.0, %v654
        %656 = vmatprep.mubr.f32.mxu0 0.0
        %657 = vmatmul.mubr.f32.gmra.mrb[0].mxu0 %v227
        %v658 = vpop.f32.mrb[0].mxu0
        %v659 = vadd.f32 0.0, %v658
        %v660 = vpop.f32.mrb[0].mxu0
        %v661 = vadd.f32 0.0, %v660
        %662 = vmatprep.mubr.f32.mxu0 0.0
        %663 = vmatmul.mubr.f32.gmra.mrb[0].mxu0 %v230
        %v664 = vpop.f32.mrb[0].mxu0
        %v665 = vadd.f32 0.0, %v664
        %v666 = vpop.f32.mrb[0].mxu0
        %v667 = vadd.f32 0.0, %v666
        %668 = vmatprep.mubr.f32.mxu0 0.0
        %669 = vmatmul.mubr.f32.gmra.mrb[0].mxu0 %v233
        %v670 = vpop.f32.mrb[0].mxu0
        %v671 = vadd.f32 0.0, %v670
        %v672 = vpop.f32.mrb[0].mxu0
        %v673 = vadd.f32 0.0, %v672
        %674 = vmatprep.mubr.f32.mxu0 0.0
        %675 = vmatmul.mubr.f32.gmra.mrb[0].mxu0 %v236
        %v676 = vpop.f32.mrb[0].mxu0
        %v677 = vadd.f32 0.0, %v676
        %v678 = vpop.f32.mrb[0].mxu0
        %v679 = vadd.f32 0.0, %v678
        %680 = vmatprep.mubr.f32.mxu0 0.0
        %681 = vmatmul.mubr.f32.gmra.mrb[0].mxu0 %v239
        %v682 = vpop.f32.mrb[0].mxu0
        %v683 = vadd.f32 0.0, %v682
        %v684 = vpop.f32.mrb[0].mxu0
        %v685 = vadd.f32 0.0, %v684
        %686 = vmatprep.mubr.f32.mxu0 0.0
        %687 = vmatmul.mubr.f32.gmra.mrb[0].mxu0 %v242
        %v688 = vpop.f32.mrb[0].mxu0
        %v689 = vadd.f32 0.0, %v688
        %v690 = vpop.f32.mrb[0].mxu0
        %v691 = vadd.f32 0.0, %v690
        %692 = vmatprep.mubr.f32.mxu0 0.0
        %693 = vmatmul.mubr.f32.gmra.mrb[0].mxu0 %v245
        %v694 = vpop.f32.mrb[0].mxu0
        %v695 = vadd.f32 0.0, %v694
        %v696 = vpop.f32.mrb[0].mxu0
        %v697 = vadd.f32 0.0, %v696
        %698 = vdwg.mxu0
        %699 = vmatprep.subr.mxu0 %v199
        %700 = vmatpush1.msra.mxu0 %v198
        %701 = vmatprep.subr.mxu0 %v215
        %702 = vmatpush1.msra.mxu0 %v214
        %703 = vmatprep.subr.mxu0 0.0
        %704 = vmatpush1.msra.mxu0 0.0
        %705 = vmatprep.subr.mxu0 0.0
        %706 = vmatpush1.msra.mxu0 0.0
        %707 = vmatprep.subr.mxu0 0.0
        %708 = vmatpush1.msra.mxu0 0.0
        %709 = vmatprep.subr.mxu0 0.0
        %710 = vmatpush1.msra.mxu0 0.0
        %711 = vmatprep.subr.mxu0 0.0
        %712 = vmatpush1.msra.mxu0 0.0
        %713 = vmatprep.subr.mxu0 0.0
        %714 = vmatpush1.msra.mxu0 0.0
        %715 = vmatprep.subr.mxu0 0.0
        %716 = vmatpush1.msra.mxu0 0.0
        %717 = vmatprep.subr.mxu0 0.0
        %718 = vmatpush1.msra.mxu0 0.0
        %719 = vmatprep.subr.mxu0 0.0
        %720 = vmatpush1.msra.mxu0 0.0
        %721 = vmatprep.subr.mxu0 0.0
        %722 = vmatpush1.msra.mxu0 0.0
        %723 = vmatprep.subr.mxu0 0.0
        %724 = vmatpush1.msra.mxu0 0.0
        %725 = vmatprep.subr.mxu0 0.0
        %726 = vmatpush1.msra.mxu0 0.0
        %727 = vmatprep.subr.mxu0 0.0
        %728 = vmatpush1.msra.mxu0 0.0
        %729 = vmatprep.subr.mxu0 0.0
        %730 = vmatpush1.msra.mxu0 0.0
        %731 = vmatprep.subr.mxu0 0.0
        %732 = vmatpush1.msra.mxu0 0.0
        %733 = vmatprep.subr.mxu0 0.0
        %734 = vmatpush1.msra.mxu0 0.0
        %735 = vmatprep.subr.mxu0 0.0
        %736 = vmatpush1.msra.mxu0 0.0
        %737 = vmatprep.subr.mxu0 0.0
        %738 = vmatpush1.msra.mxu0 0.0
        %739 = vmatprep.subr.mxu0 0.0
        %740 = vmatpush1.msra.mxu0 0.0
        %741 = vmatprep.subr.mxu0 0.0
        %742 = vmatpush1.msra.mxu0 0.0
        %743 = vmatprep.subr.mxu0 0.0
        %744 = vmatpush1.msra.mxu0 0.0
        %745 = vmatprep.subr.mxu0 0.0
        %746 = vmatpush1.msra.mxu0 0.0
        %747 = vmatprep.subr.mxu0 0.0
        %748 = vmatpush1.msra.mxu0 0.0
        %749 = vmatprep.subr.mxu0 0.0
        %750 = vmatpush1.msra.mxu0 0.0
        %751 = vmatprep.subr.mxu0 0.0
        %752 = vmatpush1.msra.mxu0 0.0
        %753 = vmatprep.subr.mxu0 0.0
        %754 = vmatpush1.msra.mxu0 0.0
        %755 = vmatprep.subr.mxu0 0.0
        %756 = vmatpush1.msra.mxu0 0.0
        %757 = vmatprep.subr.mxu0 0.0
        %758 = vmatpush1.msra.mxu0 0.0
        %759 = vmatprep.subr.mxu0 0.0
        %760 = vmatpush1.msra.mxu0 0.0
        %761 = vmatprep.subr.mxu0 0.0
        %762 = vmatpush1.msra.mxu0 0.0
        %763 = vmatprep.mubr.f32.mxu0 0.0
        %764 = vmatmul.mubr.f32.gmra.mrb[0].mxu0 %v224
        %v765 = vpop.f32.mrb[0].mxu0
        %v766 = vadd.f32 0.0, %v765
        %v767 = vpop.f32.mrb[0].mxu0
        %v768 = vadd.f32 0.0, %v767
        %769 = vmatprep.mubr.f32.mxu0 0.0
        %770 = vmatmul.mubr.f32.gmra.mrb[0].mxu0 %v227
        %v771 = vpop.f32.mrb[0].mxu0
        %v772 = vadd.f32 0.0, %v771
        %v773 = vpop.f32.mrb[0].mxu0
        %v774 = vadd.f32 0.0, %v773
        %775 = vmatprep.mubr.f32.mxu0 0.0
        %776 = vmatmul.mubr.f32.gmra.mrb[0].mxu0 %v230
        %v777 = vpop.f32.mrb[0].mxu0
        %v778 = vadd.f32 0.0, %v777
        %v779 = vpop.f32.mrb[0].mxu0
        %v780 = vadd.f32 0.0, %v779
        %781 = vmatprep.mubr.f32.mxu0 0.0
        %782 = vmatmul.mubr.f32.gmra.mrb[0].mxu0 %v233
        %v783 = vpop.f32.mrb[0].mxu0
        %v784 = vadd.f32 0.0, %v783
        %v785 = vpop.f32.mrb[0].mxu0
        %v786 = vadd.f32 0.0, %v785
        %787 = vmatprep.mubr.f32.mxu0 0.0
        %788 = vmatmul.mubr.f32.gmra.mrb[0].mxu0 %v236
        %v789 = vpop.f32.mrb[0].mxu0
        %v790 = vadd.f32 0.0, %v789
        %v791 = vpop.f32.mrb[0].mxu0
        %v792 = vadd.f32 0.0, %v791
        %793 = vmatprep.mubr.f32.mxu0 0.0
        %794 = vmatmul.mubr.f32.gmra.mrb[0].mxu0 %v239
        %v795 = vpop.f32.mrb[0].mxu0
        %v796 = vadd.f32 0.0, %v795
        %v797 = vpop.f32.mrb[0].mxu0
        %v798 = vadd.f32 0.0, %v797
        %799 = vmatprep.mubr.f32.mxu0 0.0
        %800 = vmatmul.mubr.f32.gmra.mrb[0].mxu0 %v242
        %v801 = vpop.f32.mrb[0].mxu0
        %v802 = vadd.f32 0.0, %v801
        %v803 = vpop.f32.mrb[0].mxu0
        %v804 = vadd.f32 0.0, %v803
        %805 = vmatprep.mubr.f32.mxu0 0.0
        %806 = vmatmul.mubr.f32.gmra.mrb[0].mxu0 %v245
        %v807 = vpop.f32.mrb[0].mxu0
        %v808 = vadd.f32 0.0, %v807
        %v809 = vpop.f32.mrb[0].mxu0
        %v810 = vadd.f32 0.0, %v809
        %811 = vdwg.mxu0
        %812 = vmatprep.subr.mxu0 %v201
        %813 = vmatpush1.msra.mxu0 %v200
        %814 = vmatprep.subr.mxu0 %v217
        %815 = vmatpush1.msra.mxu0 %v216
        %816 = vmatprep.subr.mxu0 0.0
        %817 = vmatpush1.msra.mxu0 0.0
        %818 = vmatprep.subr.mxu0 0.0
        %819 = vmatpush1.msra.mxu0 0.0
        %820 = vmatprep.subr.mxu0 0.0
        %821 = vmatpush1.msra.mxu0 0.0
        %822 = vmatprep.subr.mxu0 0.0
        %823 = vmatpush1.msra.mxu0 0.0
        %824 = vmatprep.subr.mxu0 0.0
        %825 = vmatpush1.msra.mxu0 0.0
        %826 = vmatprep.subr.mxu0 0.0
        %827 = vmatpush1.msra.mxu0 0.0
        %828 = vmatprep.subr.mxu0 0.0
        %829 = vmatpush1.msra.mxu0 0.0
        %830 = vmatprep.subr.mxu0 0.0
        %831 = vmatpush1.msra.mxu0 0.0
        %832 = vmatprep.subr.mxu0 0.0
        %833 = vmatpush1.msra.mxu0 0.0
        %834 = vmatprep.subr.mxu0 0.0
        %835 = vmatpush1.msra.mxu0 0.0
        %836 = vmatprep.subr.mxu0 0.0
        %837 = vmatpush1.msra.mxu0 0.0
        %838 = vmatprep.subr.mxu0 0.0
        %839 = vmatpush1.msra.mxu0 0.0
        %840 = vmatprep.subr.mxu0 0.0
        %841 = vmatpush1.msra.mxu0 0.0
        %842 = vmatprep.subr.mxu0 0.0
        %843 = vmatpush1.msra.mxu0 0.0
        %844 = vmatprep.subr.mxu0 0.0
        %845 = vmatpush1.msra.mxu0 0.0
        %846 = vmatprep.subr.mxu0 0.0
        %847 = vmatpush1.msra.mxu0 0.0
        %848 = vmatprep.subr.mxu0 0.0
        %849 = vmatpush1.msra.mxu0 0.0
        %850 = vmatprep.subr.mxu0 0.0
        %851 = vmatpush1.msra.mxu0 0.0
        %852 = vmatprep.subr.mxu0 0.0
        %853 = vmatpush1.msra.mxu0 0.0
        %854 = vmatprep.subr.mxu0 0.0
        %855 = vmatpush1.msra.mxu0 0.0
        %856 = vmatprep.subr.mxu0 0.0
        %857 = vmatpush1.msra.mxu0 0.0
        %858 = vmatprep.subr.mxu0 0.0
        %859 = vmatpush1.msra.mxu0 0.0
        %860 = vmatprep.subr.mxu0 0.0
        %861 = vmatpush1.msra.mxu0 0.0
        %862 = vmatprep.subr.mxu0 0.0
        %863 = vmatpush1.msra.mxu0 0.0
        %864 = vmatprep.subr.mxu0 0.0
        %865 = vmatpush1.msra.mxu0 0.0
        %866 = vmatprep.subr.mxu0 0.0
        %867 = vmatpush1.msra.mxu0 0.0
        %868 = vmatprep.subr.mxu0 0.0
        %869 = vmatpush1.msra.mxu0 0.0
        %870 = vmatprep.subr.mxu0 0.0
        %871 = vmatpush1.msra.mxu0 0.0
        %872 = vmatprep.subr.mxu0 0.0
        %873 = vmatpush1.msra.mxu0 0.0
        %874 = vmatprep.subr.mxu0 0.0
        %875 = vmatpush1.msra.mxu0 0.0
        %876 = vmatprep.mubr.f32.mxu0 0.0
        %877 = vmatmul.mubr.f32.gmra.mrb[0].mxu0 %v224
        %v878 = vpop.f32.mrb[0].mxu0
        %v879 = vadd.f32 0.0, %v878
        %v880 = vpop.f32.mrb[0].mxu0
        %v881 = vadd.f32 0.0, %v880
        %882 = vmatprep.mubr.f32.mxu0 0.0
        %883 = vmatmul.mubr.f32.gmra.mrb[0].mxu0 %v227
        %v884 = vpop.f32.mrb[0].mxu0
        %v885 = vadd.f32 0.0, %v884
        %v886 = vpop.f32.mrb[0].mxu0
        %v887 = vadd.f32 0.0, %v886
        %888 = vmatprep.mubr.f32.mxu0 0.0
        %889 = vmatmul.mubr.f32.gmra.mrb[0].mxu0 %v230
        %v890 = vpop.f32.mrb[0].mxu0
        %v891 = vadd.f32 0.0, %v890
        %v892 = vpop.f32.mrb[0].mxu0
        %v893 = vadd.f32 0.0, %v892
        %894 = vmatprep.mubr.f32.mxu0 0.0
        %895 = vmatmul.mubr.f32.gmra.mrb[0].mxu0 %v233
        %v896 = vpop.f32.mrb[0].mxu0
        %v897 = vadd.f32 0.0, %v896
        %v898 = vpop.f32.mrb[0].mxu0
        %v899 = vadd.f32 0.0, %v898
        %900 = vmatprep.mubr.f32.mxu0 0.0
        %901 = vmatmul.mubr.f32.gmra.mrb[0].mxu0 %v236
        %v902 = vpop.f32.mrb[0].mxu0
        %v903 = vadd.f32 0.0, %v902
        %v904 = vpop.f32.mrb[0].mxu0
        %v905 = vadd.f32 0.0, %v904
        %906 = vmatprep.mubr.f32.mxu0 0.0
        %907 = vmatmul.mubr.f32.gmra.mrb[0].mxu0 %v239
        %v908 = vpop.f32.mrb[0].mxu0
        %v909 = vadd.f32 0.0, %v908
        %v910 = vpop.f32.mrb[0].mxu0
        %v911 = vadd.f32 0.0, %v910
        %912 = vmatprep.mubr.f32.mxu0 0.0
        %913 = vmatmul.mubr.f32.gmra.mrb[0].mxu0 %v242
        %v914 = vpop.f32.mrb[0].mxu0
        %v915 = vadd.f32 0.0, %v914
        %v916 = vpop.f32.mrb[0].mxu0
        %v917 = vadd.f32 0.0, %v916
        %918 = vmatprep.mubr.f32.mxu0 0.0
        %919 = vmatmul.mubr.f32.gmra.mrb[0].mxu0 %v245
        %v920 = vpop.f32.mrb[0].mxu0
        %v921 = vadd.f32 0.0, %v920
        %v922 = vpop.f32.mrb[0].mxu0
        %v923 = vadd.f32 0.0, %v922
        %924 = vdwg.mxu0
        %925 = vmatprep.subr.mxu0 %v203
        %926 = vmatpush1.msra.mxu0 %v202
        %927 = vmatprep.subr.mxu0 %v219
        %928 = vmatpush1.msra.mxu0 %v218
        %929 = vmatprep.subr.mxu0 0.0
        %930 = vmatpush1.msra.mxu0 0.0
        %931 = vmatprep.subr.mxu0 0.0
        %932 = vmatpush1.msra.mxu0 0.0
        %933 = vmatprep.subr.mxu0 0.0
        %934 = vmatpush1.msra.mxu0 0.0
        %935 = vmatprep.subr.mxu0 0.0
        %936 = vmatpush1.msra.mxu0 0.0
        %937 = vmatprep.subr.mxu0 0.0
        %938 = vmatpush1.msra.mxu0 0.0
        %939 = vmatprep.subr.mxu0 0.0
        %940 = vmatpush1.msra.mxu0 0.0
        %941 = vmatprep.subr.mxu0 0.0
        %942 = vmatpush1.msra.mxu0 0.0
        %943 = vmatprep.subr.mxu0 0.0
        %944 = vmatpush1.msra.mxu0 0.0
        %945 = vmatprep.subr.mxu0 0.0
        %946 = vmatpush1.msra.mxu0 0.0
        %947 = vmatprep.subr.mxu0 0.0
        %948 = vmatpush1.msra.mxu0 0.0
        %949 = vmatprep.subr.mxu0 0.0
        %950 = vmatpush1.msra.mxu0 0.0
        %951 = vmatprep.subr.mxu0 0.0
        %952 = vmatpush1.msra.mxu0 0.0
        %953 = vmatprep.subr.mxu0 0.0
        %954 = vmatpush1.msra.mxu0 0.0
        %955 = vmatprep.subr.mxu0 0.0
        %956 = vmatpush1.msra.mxu0 0.0
        %957 = vmatprep.subr.mxu0 0.0
        %958 = vmatpush1.msra.mxu0 0.0
        %959 = vmatprep.subr.mxu0 0.0
        %960 = vmatpush1.msra.mxu0 0.0
        %961 = vmatprep.subr.mxu0 0.0
        %962 = vmatpush1.msra.mxu0 0.0
        %963 = vmatprep.subr.mxu0 0.0
        %964 = vmatpush1.msra.mxu0 0.0
        %965 = vmatprep.subr.mxu0 0.0
        %966 = vmatpush1.msra.mxu0 0.0
        %967 = vmatprep.subr.mxu0 0.0
        %968 = vmatpush1.msra.mxu0 0.0
        %969 = vmatprep.subr.mxu0 0.0
        %970 = vmatpush1.msra.mxu0 0.0
        %971 = vmatprep.subr.mxu0 0.0
        %972 = vmatpush1.msra.mxu0 0.0
        %973 = vmatprep.subr.mxu0 0.0
        %974 = vmatpush1.msra.mxu0 0.0
        %975 = vmatprep.subr.mxu0 0.0
        %976 = vmatpush1.msra.mxu0 0.0
        %977 = vmatprep.subr.mxu0 0.0
        %978 = vmatpush1.msra.mxu0 0.0
        %979 = vmatprep.subr.mxu0 0.0
        %980 = vmatpush1.msra.mxu0 0.0
        %981 = vmatprep.subr.mxu0 0.0
        %982 = vmatpush1.msra.mxu0 0.0
        %983 = vmatprep.subr.mxu0 0.0
        %984 = vmatpush1.msra.mxu0 0.0
        %985 = vmatprep.subr.mxu0 0.0
        %986 = vmatpush1.msra.mxu0 0.0
        %987 = vmatprep.subr.mxu0 0.0
        %988 = vmatpush1.msra.mxu0 0.0
        %989 = vmatprep.mubr.f32.mxu0 0.0
        %990 = vmatmul.mubr.f32.gmra.mrb[0].mxu0 %v224
        %v991 = vpop.f32.mrb[0].mxu0
        %v992 = vadd.f32 0.0, %v991
        %v993 = vpop.f32.mrb[0].mxu0
        %v994 = vadd.f32 0.0, %v993
        %995 = vmatprep.mubr.f32.mxu0 0.0
        %996 = vmatmul.mubr.f32.gmra.mrb[0].mxu0 %v227
        %v997 = vpop.f32.mrb[0].mxu0
        %v998 = vadd.f32 0.0, %v997
        %v999 = vpop.f32.mrb[0].mxu0
        %v1000 = vadd.f32 0.0, %v999
        %1001 = vmatprep.mubr.f32.mxu0 0.0
        %1002 = vmatmul.mubr.f32.gmra.mrb[0].mxu0 %v230
        %v1003 = vpop.f32.mrb[0].mxu0
        %v1004 = vadd.f32 0.0, %v1003
        %v1005 = vpop.f32.mrb[0].mxu0
        %v1006 = vadd.f32 0.0, %v1005
        %1007 = vmatprep.mubr.f32.mxu0 0.0
        %1008 = vmatmul.mubr.f32.gmra.mrb[0].mxu0 %v233
        %v1009 = vpop.f32.mrb[0].mxu0
        %v1010 = vadd.f32 0.0, %v1009
        %v1011 = vpop.f32.mrb[0].mxu0
        %v1012 = vadd.f32 0.0, %v1011
        %1013 = vmatprep.mubr.f32.mxu0 0.0
        %1014 = vmatmul.mubr.f32.gmra.mrb[0].mxu0 %v236
        %v1015 = vpop.f32.mrb[0].mxu0
        %v1016 = vadd.f32 0.0, %v1015
        %v1017 = vpop.f32.mrb[0].mxu0
        %v1018 = vadd.f32 0.0, %v1017
        %1019 = vmatprep.mubr.f32.mxu0 0.0
        %1020 = vmatmul.mubr.f32.gmra.mrb[0].mxu0 %v239
        %v1021 = vpop.f32.mrb[0].mxu0
        %v1022 = vadd.f32 0.0, %v1021
        %v1023 = vpop.f32.mrb[0].mxu0
        %v1024 = vadd.f32 0.0, %v1023
        %1025 = vmatprep.mubr.f32.mxu0 0.0
        %1026 = vmatmul.mubr.f32.gmra.mrb[0].mxu0 %v242
        %v1027 = vpop.f32.mrb[0].mxu0
        %v1028 = vadd.f32 0.0, %v1027
        %v1029 = vpop.f32.mrb[0].mxu0
        %v1030 = vadd.f32 0.0, %v1029
        %1031 = vmatprep.mubr.f32.mxu0 0.0
        %1032 = vmatmul.mubr.f32.gmra.mrb[0].mxu0 %v245
        %v1033 = vpop.f32.mrb[0].mxu0
        %v1034 = vadd.f32 0.0, %v1033
        %v1035 = vpop.f32.mrb[0].mxu0
        %v1036 = vadd.f32 0.0, %v1035
        %1037 = vdwg.mxu0
        %1038 = vmatprep.subr.mxu0 %v205
        %1039 = vmatpush1.msra.mxu0 %v204
        %1040 = vmatprep.subr.mxu0 %v221
        %1041 = vmatpush1.msra.mxu0 %v220
        %1042 = vmatprep.subr.mxu0 0.0
        %1043 = vmatpush1.msra.mxu0 0.0
        %1044 = vmatprep.subr.mxu0 0.0
        %1045 = vmatpush1.msra.mxu0 0.0
        %1046 = vmatprep.subr.mxu0 0.0
        %1047 = vmatpush1.msra.mxu0 0.0
        %1048 = vmatprep.subr.mxu0 0.0
        %1049 = vmatpush1.msra.mxu0 0.0
        %1050 = vmatprep.subr.mxu0 0.0
        %1051 = vmatpush1.msra.mxu0 0.0
        %1052 = vmatprep.subr.mxu0 0.0
        %1053 = vmatpush1.msra.mxu0 0.0
        %1054 = vmatprep.subr.mxu0 0.0
        %1055 = vmatpush1.msra.mxu0 0.0
        %1056 = vmatprep.subr.mxu0 0.0
        %1057 = vmatpush1.msra.mxu0 0.0
        %1058 = vmatprep.subr.mxu0 0.0
        %1059 = vmatpush1.msra.mxu0 0.0
        %1060 = vmatprep.subr.mxu0 0.0
        %1061 = vmatpush1.msra.mxu0 0.0
        %1062 = vmatprep.subr.mxu0 0.0
        %1063 = vmatpush1.msra.mxu0 0.0
        %1064 = vmatprep.subr.mxu0 0.0
        %1065 = vmatpush1.msra.mxu0 0.0
        %1066 = vmatprep.subr.mxu0 0.0
        %1067 = vmatpush1.msra.mxu0 0.0
        %1068 = vmatprep.subr.mxu0 0.0
        %1069 = vmatpush1.msra.mxu0 0.0
        %1070 = vmatprep.subr.mxu0 0.0
        %1071 = vmatpush1.msra.mxu0 0.0
        %1072 = vmatprep.subr.mxu0 0.0
        %1073 = vmatpush1.msra.mxu0 0.0
        %1074 = vmatprep.subr.mxu0 0.0
        %1075 = vmatpush1.msra.mxu0 0.0
        %1076 = vmatprep.subr.mxu0 0.0
        %1077 = vmatpush1.msra.mxu0 0.0
        %1078 = vmatprep.subr.mxu0 0.0
        %1079 = vmatpush1.msra.mxu0 0.0
        %1080 = vmatprep.subr.mxu0 0.0
        %1081 = vmatpush1.msra.mxu0 0.0
        %1082 = vmatprep.subr.mxu0 0.0
        %1083 = vmatpush1.msra.mxu0 0.0
        %1084 = vmatprep.subr.mxu0 0.0
        %1085 = vmatpush1.msra.mxu0 0.0
        %1086 = vmatprep.subr.mxu0 0.0
        %1087 = vmatpush1.msra.mxu0 0.0
        %1088 = vmatprep.subr.mxu0 0.0
        %1089 = vmatpush1.msra.mxu0 0.0
        %1090 = vmatprep.subr.mxu0 0.0
        %1091 = vmatpush1.msra.mxu0 0.0
        %1092 = vmatprep.subr.mxu0 0.0
        %1093 = vmatpush1.msra.mxu0 0.0
        %1094 = vmatprep.subr.mxu0 0.0
        %1095 = vmatpush1.msra.mxu0 0.0
        %1096 = vmatprep.subr.mxu0 0.0
        %1097 = vmatpush1.msra.mxu0 0.0
        %1098 = vmatprep.subr.mxu0 0.0
        %1099 = vmatpush1.msra.mxu0 0.0
        %1100 = vmatprep.subr.mxu0 0.0
        %1101 = vmatpush1.msra.mxu0 0.0
        %1102 = vmatprep.mubr.f32.mxu0 0.0
        %1103 = vmatmul.mubr.f32.gmra.mrb[0].mxu0 %v224
        %v1104 = vpop.f32.mrb[0].mxu0
        %v1105 = vadd.f32 0.0, %v1104
        %v1106 = vpop.f32.mrb[0].mxu0
        %v1107 = vadd.f32 0.0, %v1106
        %1108 = vmatprep.mubr.f32.mxu0 0.0
        %1109 = vmatmul.mubr.f32.gmra.mrb[0].mxu0 %v227
        %v1110 = vpop.f32.mrb[0].mxu0
        %v1111 = vadd.f32 0.0, %v1110
        %v1112 = vpop.f32.mrb[0].mxu0
        %v1113 = vadd.f32 0.0, %v1112
        %1114 = vmatprep.mubr.f32.mxu0 0.0
        %1115 = vmatmul.mubr.f32.gmra.mrb[0].mxu0 %v230
        %v1116 = vpop.f32.mrb[0].mxu0
        %v1117 = vadd.f32 0.0, %v1116
        %v1118 = vpop.f32.mrb[0].mxu0
        %v1119 = vadd.f32 0.0, %v1118
        %1120 = vmatprep.mubr.f32.mxu0 0.0
        %1121 = vmatmul.mubr.f32.gmra.mrb[0].mxu0 %v233
        %v1122 = vpop.f32.mrb[0].mxu0
        %v1123 = vadd.f32 0.0, %v1122
        %v1124 = vpop.f32.mrb[0].mxu0
        %v1125 = vadd.f32 0.0, %v1124
        %1126 = vmatprep.mubr.f32.mxu0 0.0
        %1127 = vmatmul.mubr.f32.gmra.mrb[0].mxu0 %v236
        %v1128 = vpop.f32.mrb[0].mxu0
        %v1129 = vadd.f32 0.0, %v1128
        %v1130 = vpop.f32.mrb[0].mxu0
        %v1131 = vadd.f32 0.0, %v1130
        %1132 = vmatprep.mubr.f32.mxu0 0.0
        %1133 = vmatmul.mubr.f32.gmra.mrb[0].mxu0 %v239
        %v1134 = vpop.f32.mrb[0].mxu0
        %v1135 = vadd.f32 0.0, %v1134
        %v1136 = vpop.f32.mrb[0].mxu0
        %v1137 = vadd.f32 0.0, %v1136
        %1138 = vmatprep.mubr.f32.mxu0 0.0
        %1139 = vmatmul.mubr.f32.gmra.mrb[0].mxu0 %v242
        %v1140 = vpop.f32.mrb[0].mxu0
        %v1141 = vadd.f32 0.0, %v1140
        %v1142 = vpop.f32.mrb[0].mxu0
        %v1143 = vadd.f32 0.0, %v1142
        %1144 = vmatprep.mubr.f32.mxu0 0.0
        %1145 = vmatmul.mubr.f32.gmra.mrb[0].mxu0 %v245
        %v1146 = vpop.f32.mrb[0].mxu0
        %v1147 = vadd.f32 0.0, %v1146
        %v1148 = vpop.f32.mrb[0].mxu0
        %v1149 = vadd.f32 0.0, %v1148
        %1150 = vdwg.mxu0
        %v1151 = vtanh.pop %v314
        %v1152 = vtanh.pop %v316
        %v1153 = vtanh.pop %v427
        %v1154 = vtanh.pop %v429
        %v1155 = vtanh.pop %v540
        %v1156 = vtanh.pop %v542
        %v1157 = vtanh.pop %v653
        %v1158 = vtanh.pop %v655
        %v1159 = vtanh.pop %v766
        %v1160 = vtanh.pop %v768
        %v1161 = vtanh.pop %v879
        %v1162 = vtanh.pop %v881
        %v1163 = vtanh.pop %v992
        %v1164 = vtanh.pop %v994
        %v1165 = vtanh.pop %v1105
        %v1166 = vtanh.pop %v1107
        %v1167 = vtanh.pop %v320
        %v1168 = vtanh.pop %v322
        %v1169 = vtanh.pop %v433
        %v1170 = vtanh.pop %v435
        %v1171 = vtanh.pop %v546
        %v1172 = vtanh.pop %v548
        %v1173 = vtanh.pop %v659
        %v1174 = vtanh.pop %v661
        %v1175 = vtanh.pop %v772
        %v1176 = vtanh.pop %v774
        %v1177 = vtanh.pop %v885
        %v1178 = vtanh.pop %v887
        %v1179 = vtanh.pop %v998
        %v1180 = vtanh.pop %v1000
        %v1181 = vtanh.pop %v1111
        %v1182 = vtanh.pop %v1113
        %v1183 = vtanh.pop %v326
        %v1184 = vtanh.pop %v328
        %v1185 = vtanh.pop %v439
        %v1186 = vtanh.pop %v441
        %v1187 = vtanh.pop %v552
        %v1188 = vtanh.pop %v554
        %v1189 = vtanh.pop %v665
        %v1190 = vtanh.pop %v667
        %v1191 = vtanh.pop %v778
        %v1192 = vtanh.pop %v780
        %v1193 = vtanh.pop %v891
        %v1194 = vtanh.pop %v893
        %v1195 = vtanh.pop %v1004
        %v1196 = vtanh.pop %v1006
        %v1197 = vtanh.pop %v1117
        %v1198 = vtanh.pop %v1119
        %v1199 = vtanh.pop %v332
        %v1200 = vtanh.pop %v334
        %v1201 = vtanh.pop %v445
        %v1202 = vtanh.pop %v447
        %v1203 = vtanh.pop %v558
        %v1204 = vtanh.pop %v560
        %v1205 = vtanh.pop %v671
        %v1206 = vtanh.pop %v673
        %v1207 = vtanh.pop %v784
        %v1208 = vtanh.pop %v786
        %v1209 = vtanh.pop %v897
        %v1210 = vtanh.pop %v899
        %v1211 = vtanh.pop %v1010
        %v1212 = vtanh.pop %v1012
        %v1213 = vtanh.pop %v1123
        %v1214 = vtanh.pop %v1125
        %v1215 = vtanh.pop %v338
        %v1216 = vtanh.pop %v340
        %v1217 = vtanh.pop %v451
        %v1218 = vtanh.pop %v453
        %v1219 = vtanh.pop %v564
        %v1220 = vtanh.pop %v566
        %v1221 = vtanh.pop %v677
        %v1222 = vtanh.pop %v679
        %v1223 = vtanh.pop %v790
        %v1224 = vtanh.pop %v792
        %v1225 = vtanh.pop %v903
        %v1226 = vtanh.pop %v905
        %v1227 = vtanh.pop %v1016
        %v1228 = vtanh.pop %v1018
        %v1229 = vtanh.pop %v1129
        %v1230 = vtanh.pop %v1131
        %v1231 = vtanh.pop %v344
        %v1232 = vtanh.pop %v346
        %v1233 = vtanh.pop %v457
        %v1234 = vtanh.pop %v459
        %v1235 = vtanh.pop %v570
        %v1236 = vtanh.pop %v572
        %v1237 = vtanh.pop %v683
        %v1238 = vtanh.pop %v685
        %v1239 = vtanh.pop %v796
        %v1240 = vtanh.pop %v798
        %v1241 = vtanh.pop %v909
        %v1242 = vtanh.pop %v911
        %v1243 = vtanh.pop %v1022
        %v1244 = vtanh.pop %v1024
        %v1245 = vtanh.pop %v1135
        %v1246 = vtanh.pop %v1137
        %v1247 = vtanh.pop %v350
        %v1248 = vtanh.pop %v352
        %v1249 = vtanh.pop %v463
        %v1250 = vtanh.pop %v465
        %v1251 = vtanh.pop %v576
        %v1252 = vtanh.pop %v578
        %v1253 = vtanh.pop %v689
        %v1254 = vtanh.pop %v691
        %v1255 = vtanh.pop %v802
        %v1256 = vtanh.pop %v804
        %v1257 = vtanh.pop %v915
        %v1258 = vtanh.pop %v917
        %v1259 = vtanh.pop %v1028
        %v1260 = vtanh.pop %v1030
        %v1261 = vtanh.pop %v1141
        %v1262 = vtanh.pop %v1143
        %v1263 = vtanh.pop %v356
        %v1264 = vtanh.pop %v358
        %v1265 = vtanh.pop %v469
        %v1266 = vtanh.pop %v471
        %v1267 = vtanh.pop %v582
        %v1268 = vtanh.pop %v584
        %v1269 = vtanh.pop %v695
        %v1270 = vtanh.pop %v697
        %v1271 = vtanh.pop %v808
        %v1272 = vtanh.pop %v810
        %v1273 = vtanh.pop %v921
        %v1274 = vtanh.pop %v923
        %v1275 = vtanh.pop %v1034
        %v1276 = vtanh.pop %v1036
        %v1277 = vtanh.pop %v1147
        %v1278 = vtanh.pop %v1149
        %1279 = vst [vmem:[%s179] sm:$0xff] %v1151
        %1280 = vst [vmem:[%s179 + $0x8] sm:$0xff] %v1152
        %1281 = vst [vmem:[%s179 + $0x10] sm:$0xff] %v1153
        %1282 = vst [vmem:[%s179 + $0x18] sm:$0xff] %v1154
        %1283 = vst [vmem:[%s179 + $0x20] sm:$0xff] %v1155
        %1284 = vst [vmem:[%s179 + $0x28] sm:$0xff] %v1156
        %1285 = vst [vmem:[%s179 + $0x30] sm:$0xff] %v1157
        %1286 = vst [vmem:[%s179 + $0x38] sm:$0xff] %v1158
        %1287 = vst [vmem:[%s179 + $0x40] sm:$0xff] %v1159
        %1288 = vst [vmem:[%s179 + $0x48] sm:$0xff] %v1160
        %1289 = vst [vmem:[%s179 + $0x50] sm:$0xff] %v1161
        %1290 = vst [vmem:[%s179 + $0x58] sm:$0xff] %v1162
        %1291 = vst [vmem:[%s179 + $0x60] sm:$0xff] %v1163
        %1292 = vst [vmem:[%s179 + $0x68] sm:$0xff] %v1164
        %1293 = vst [vmem:[%s179 + $0x70] sm:$0xff] %v1165
        %1294 = vst [vmem:[%s179 + $0x78] sm:$0xff] %v1166
        %1295 = vst [vmem:[%s179 + $0x80] sm:$0xff] %v1167
        %1296 = vst [vmem:[%s179 + $0x88] sm:$0xff] %v1168
        %1297 = vst [vmem:[%s179 + $0x90] sm:$0xff] %v1169
        %1298 = vst [vmem:[%s179 + $0x98] sm:$0xff] %v1170
        %1299 = vst [vmem:[%s179 + $0xa0] sm:$0xff] %v1171
        %1300 = vst [vmem:[%s179 + $0xa8] sm:$0xff] %v1172
        %1301 = vst [vmem:[%s179 + $0xb0] sm:$0xff] %v1173
        %1302 = vst [vmem:[%s179 + $0xb8] sm:$0xff] %v1174
        %1303 = vst [vmem:[%s179 + $0xc0] sm:$0xff] %v1175
        %1304 = vst [vmem:[%s179 + $0xc8] sm:$0xff] %v1176
        %1305 = vst [vmem:[%s179 + $0xd0] sm:$0xff] %v1177
        %1306 = vst [vmem:[%s179 + $0xd8] sm:$0xff] %v1178
        %1307 = vst [vmem:[%s179 + $0xe0] sm:$0xff] %v1179
        %1308 = vst [vmem:[%s179 + $0xe8] sm:$0xff] %v1180
        %1309 = vst [vmem:[%s179 + $0xf0] sm:$0xff] %v1181
        %1310 = vst [vmem:[%s179 + $0xf8] sm:$0xff] %v1182
        %1311 = vst [vmem:[%s179 + $0x100] sm:$0xff] %v1183
        %1312 = vst [vmem:[%s179 + $0x108] sm:$0xff] %v1184
        %1313 = vst [vmem:[%s179 + $0x110] sm:$0xff] %v1185
        %1314 = vst [vmem:[%s179 + $0x118] sm:$0xff] %v1186
        %1315 = vst [vmem:[%s179 + $0x120] sm:$0xff] %v1187
        %1316 = vst [vmem:[%s179 + $0x128] sm:$0xff] %v1188
        %1317 = vst [vmem:[%s179 + $0x130] sm:$0xff] %v1189
        %1318 = vst [vmem:[%s179 + $0x138] sm:$0xff] %v1190
        %1319 = vst [vmem:[%s179 + $0x140] sm:$0xff] %v1191
        %1320 = vst [vmem:[%s179 + $0x148] sm:$0xff] %v1192
        %1321 = vst [vmem:[%s179 + $0x150] sm:$0xff] %v1193
        %1322 = vst [vmem:[%s179 + $0x158] sm:$0xff] %v1194
        %1323 = vst [vmem:[%s179 + $0x160] sm:$0xff] %v1195
        %1324 = vst [vmem:[%s179 + $0x168] sm:$0xff] %v1196
        %1325 = vst [vmem:[%s179 + $0x170] sm:$0xff] %v1197
        %1326 = vst [vmem:[%s179 + $0x178] sm:$0xff] %v1198
        %1327 = vst [vmem:[%s179 + $0x180] sm:$0xff] %v1199
        %1328 = vst [vmem:[%s179 + $0x188] sm:$0xff] %v1200
        %1329 = vst [vmem:[%s179 + $0x190] sm:$0xff] %v1201
        %1330 = vst [vmem:[%s179 + $0x198] sm:$0xff] %v1202
        %1331 = vst [vmem:[%s179 + $0x1a0] sm:$0xff] %v1203
        %1332 = vst [vmem:[%s179 + $0x1a8] sm:$0xff] %v1204
        %1333 = vst [vmem:[%s179 + $0x1b0] sm:$0xff] %v1205
        %1334 = vst [vmem:[%s179 + $0x1b8] sm:$0xff] %v1206
        %1335 = vst [vmem:[%s179 + $0x1c0] sm:$0xff] %v1207
        %1336 = vst [vmem:[%s179 + $0x1c8] sm:$0xff] %v1208
        %1337 = vst [vmem:[%s179 + $0x1d0] sm:$0xff] %v1209
        %1338 = vst [vmem:[%s179 + $0x1d8] sm:$0xff] %v1210
        %1339 = vst [vmem:[%s179 + $0x1e0] sm:$0xff] %v1211
        %1340 = vst [vmem:[%s179 + $0x1e8] sm:$0xff] %v1212
        %1341 = vst [vmem:[%s179 + $0x1f0] sm:$0xff] %v1213
        %1342 = vst [vmem:[%s179 + $0x1f8] sm:$0xff] %v1214
        %1343 = vst [vmem:[%s179 + $0x200] sm:$0xff] %v1215
        %1344 = vst [vmem:[%s179 + $0x208] sm:$0xff] %v1216
        %1345 = vst [vmem:[%s179 + $0x210] sm:$0xff] %v1217
        %1346 = vst [vmem:[%s179 + $0x218] sm:$0xff] %v1218
        %1347 = vst [vmem:[%s179 + $0x220] sm:$0xff] %v1219
        %1348 = vst [vmem:[%s179 + $0x228] sm:$0xff] %v1220
        %1349 = vst [vmem:[%s179 + $0x230] sm:$0xff] %v1221
        %1350 = vst [vmem:[%s179 + $0x238] sm:$0xff] %v1222
        %1351 = vst [vmem:[%s179 + $0x240] sm:$0xff] %v1223
        %1352 = vst [vmem:[%s179 + $0x248] sm:$0xff] %v1224
        %1353 = vst [vmem:[%s179 + $0x250] sm:$0xff] %v1225
        %1354 = vst [vmem:[%s179 + $0x258] sm:$0xff] %v1226
        %1355 = vst [vmem:[%s179 + $0x260] sm:$0xff] %v1227
        %1356 = vst [vmem:[%s179 + $0x268] sm:$0xff] %v1228
        %1357 = vst [vmem:[%s179 + $0x270] sm:$0xff] %v1229
        %1358 = vst [vmem:[%s179 + $0x278] sm:$0xff] %v1230
        %1359 = vst [vmem:[%s179 + $0x280] sm:$0xff] %v1231
        %1360 = vst [vmem:[%s179 + $0x288] sm:$0xff] %v1232
        %1361 = vst [vmem:[%s179 + $0x290] sm:$0xff] %v1233
        %1362 = vst [vmem:[%s179 + $0x298] sm:$0xff] %v1234
        %1363 = vst [vmem:[%s179 + $0x2a0] sm:$0xff] %v1235
        %1364 = vst [vmem:[%s179 + $0x2a8] sm:$0xff] %v1236
        %1365 = vst [vmem:[%s179 + $0x2b0] sm:$0xff] %v1237
        %1366 = vst [vmem:[%s179 + $0x2b8] sm:$0xff] %v1238
        %1367 = vst [vmem:[%s179 + $0x2c0] sm:$0xff] %v1239
        %1368 = vst [vmem:[%s179 + $0x2c8] sm:$0xff] %v1240
        %1369 = vst [vmem:[%s179 + $0x2d0] sm:$0xff] %v1241
        %1370 = vst [vmem:[%s179 + $0x2d8] sm:$0xff] %v1242
        %1371 = vst [vmem:[%s179 + $0x2e0] sm:$0xff] %v1243
        %1372 = vst [vmem:[%s179 + $0x2e8] sm:$0xff] %v1244
        %1373 = vst [vmem:[%s179 + $0x2f0] sm:$0xff] %v1245
        %1374 = vst [vmem:[%s179 + $0x2f8] sm:$0xff] %v1246
        %1375 = vst [vmem:[%s179 + $0x300] sm:$0xff] %v1247
        %1376 = vst [vmem:[%s179 + $0x308] sm:$0xff] %v1248
        %1377 = vst [vmem:[%s179 + $0x310] sm:$0xff] %v1249
        %1378 = vst [vmem:[%s179 + $0x318] sm:$0xff] %v1250
        %1379 = vst [vmem:[%s179 + $0x320] sm:$0xff] %v1251
        %1380 = vst [vmem:[%s179 + $0x328] sm:$0xff] %v1252
        %1381 = vst [vmem:[%s179 + $0x330] sm:$0xff] %v1253
        %1382 = vst [vmem:[%s179 + $0x338] sm:$0xff] %v1254
        %1383 = vst [vmem:[%s179 + $0x340] sm:$0xff] %v1255
        %1384 = vst [vmem:[%s179 + $0x348] sm:$0xff] %v1256
        %1385 = vst [vmem:[%s179 + $0x350] sm:$0xff] %v1257
        %1386 = vst [vmem:[%s179 + $0x358] sm:$0xff] %v1258
        %1387 = vst [vmem:[%s179 + $0x360] sm:$0xff] %v1259
        %1388 = vst [vmem:[%s179 + $0x368] sm:$0xff] %v1260
        %1389 = vst [vmem:[%s179 + $0x370] sm:$0xff] %v1261
        %1390 = vst [vmem:[%s179 + $0x378] sm:$0xff] %v1262
        %1391 = vst [vmem:[%s179 + $0x380] sm:$0xff] %v1263
        %1392 = vst [vmem:[%s179 + $0x388] sm:$0xff] %v1264
        %1393 = vst [vmem:[%s179 + $0x390] sm:$0xff] %v1265
        %1394 = vst [vmem:[%s179 + $0x398] sm:$0xff] %v1266
        %1395 = vst [vmem:[%s179 + $0x3a0] sm:$0xff] %v1267
        %1396 = vst [vmem:[%s179 + $0x3a8] sm:$0xff] %v1268
        %1397 = vst [vmem:[%s179 + $0x3b0] sm:$0xff] %v1269
        %1398 = vst [vmem:[%s179 + $0x3b8] sm:$0xff] %v1270
        %1399 = vst [vmem:[%s179 + $0x3c0] sm:$0xff] %v1271
        %1400 = vst [vmem:[%s179 + $0x3c8] sm:$0xff] %v1272
        %1401 = vst [vmem:[%s179 + $0x3d0] sm:$0xff] %v1273
        %1402 = vst [vmem:[%s179 + $0x3d8] sm:$0xff] %v1274
        %1403 = vst [vmem:[%s179 + $0x3e0] sm:$0xff] %v1275
        %1404 = vst [vmem:[%s179 + $0x3e8] sm:$0xff] %v1276
        %1405 = vst [vmem:[%s179 + $0x3f0] sm:$0xff] %v1277
        %1406 = vst [vmem:[%s179 + $0x3f8] sm:$0xff] %v1278
        %s1407 = sand.u32 %s90, 1
        %s1408 = scalar_lea.sflag [#allocation4], %s1407
        %s1409 = sand.u32 %s90, 1
        %s1410 = smul.addr %s1409, 1024
        %s1411 = scalar_lea.vmem [#allocation5], %s1410
        // Predicated region
        $region33: #{tpu_custom_call.1} parent=27 // pred_check
          %p1412 = pneg %p100
        $region34: #{tpu_custom_call.1} parent=27 // pred_check_branch
          %1414 = sbr.rel (%p1412) target = $region36
        $region35: #{tpu_custom_call.1} parent=27 // pred_region
          %s1415 = smul.u32 16, %s24
          %s1417 = ssub.s32 16384, 16384
          %1418 = vsyncadd %s1408, %s1417
          %s1419 = smul.addr %s23, 256
          %s1420 = sadd.s32 %s1415, %s1419
          %s1421 = smul.addr %s1420, 128
          %s1422 = scalar_lea.hbm %s2, %s1421
          %s1423 = sshll.u32 %s1411, 4
          %s1424 = int_to_ptr.vmem [resolvable:$true] %s1423
          %1429 = dma.vmem_to_hbm [thread:$0]  %s1424, 16384, %s1422, %s1408, 2048, 4096, 128
        $region36: #{tpu_custom_call.1} parent=27 // pred_fallthru
          _
      $region28: #{tpu_custom_call.1} parent=5 // pred_fallthru
        _
      %p1430 = scmp.le.s32.totalorder 2, %s14
      // Predicated region
      $region37: #{tpu_custom_call.1} parent=5 // pred_check
        %p1431 = pneg %p1430
      $region38: #{tpu_custom_call.1} parent=5 // pred_check_branch
        %1433 = sbr.rel (%p1431) target = $region40
      $region39: #{tpu_custom_call.1} parent=5 // pred_region
        %s1434 = ssub.s32 %s14, 2
        // Predicated region
        $region41: #{tpu_custom_call.1} parent=39 // pred_check
          %p1435 = pneg %p106
        $region42: #{tpu_custom_call.1} parent=39 // pred_check_branch
          %1437 = sbr.rel (%p1435) target = $region44
        $region43: #{tpu_custom_call.1} parent=39 // pred_region
          %s1438 = sand.u32 %s91, 1
          %s1439 = scalar_lea.sflag [#allocation4], %s1438
          %s1440 = sand.u32 %s91, 1
          %s1441 = smul.addr %s1440, 1024
          %s1442 = scalar_lea.vmem [#allocation5], %s1441
          %1443 = dma.done %s1439, 16384
        $region44: #{tpu_custom_call.1} parent=39 // pred_fallthru
          _
      $region40: #{tpu_custom_call.1} parent=5 // pred_fallthru
        _
    $region6: #{tpu_custom_call.1} parent=1 // loop_footer
      %s18 = sadd.s32 1, %s14
    $region7: #{tpu_custom_call.1} parent=1 // loop_footer_branch
      %13 = sbr.rel target = $region3
    $region8: #{tpu_custom_call.1} parent=1 // loop_exit
      _
    %1444 = vsyncpa [#allocation3], 1
    %s1445 = scalar_lea.sflag [#allocation3], 1
    %1446 = vsyncpa %s1445, 1
    %1447 = vsyncpa [#allocation4], 1
    %s1448 = scalar_lea.sflag [#allocation4], 1
    %1449 = vsyncpa %s1448, 1

</llo_original>
